<compile_context>
chip_gen: v7x
topology: tpu7x:2x2x1
jax: 0.10.0
libtpu: 0.0.40
codegen_flags: <defaults>
</compile_context>

<pallas_src>
import jax
import jax.numpy as jnp
from jax import lax
from jax.experimental import pallas as pl
from jax.experimental.pallas import tpu as pltpu


def _head_kernel(x_ref, wd_ref, bd_ref, wcbd_ref, bc_ref, out_ref):
    """Fused dense -> tanh -> block-diagonal per-task classifier.

    x_ref    : [TN, H]       token tile
    wd_ref   : [T*H, H]      dense weight, natural nn.Linear layout (out, in)
    bd_ref   : [1, T*H]      dense bias (f32)
    wcbd_ref : [T*H, TPAD]   block-diagonal classifier weight (f32)
    bc_ref   : [1, TPAD]     classifier bias broadcast row (f32)
    out_ref  : [TN, TPAD]    lane-dense logits; columns >= T are padding
    """
    x = x_ref[...]
    # Dense: x @ Wd^T on the MXU (contraction on H of both operands), f32 acc.
    h = lax.dot_general(
        x, wd_ref[...],
        dimension_numbers=(((1,), (1,)), ((), ())),
        preferred_element_type=jnp.float32)                       # [TN, T*H]
    # TODO(synk): dropout is identity (inference mode); no stochastic masking.
    h = jnp.tanh(h + bd_ref[...])                                 # f32 epilogue, EUP tanh
    # All T task classifiers in a single MXU matmul via the block-diagonal
    # weight; output is lane-dense so the store is an unmasked vst.
    y = jnp.dot(h, wcbd_ref[...], preferred_element_type=jnp.float32)
    out_ref[...] = y + bc_ref[...]                                # [TN, TPAD]


def _pick_tile_n(n: int) -> int:
    """Largest sublane-friendly tile that divides N, capped for v7x VMEM."""
    for cand in (512, 256, 128, 64, 32, 16, 8):
        if n % cand == 0:
            return cand
    return n  # tiny / odd N: single full block


def token_binary_classification_head(hidden_state, dense_w, dense_b,
                                     cls_w, cls_b, num_tasks):
    """hidden_state: [B, S, H] -> [B, T, S] (matches the PyTorch forward)."""
    B, S, H = hidden_state.shape
    N = B * S
    TH = num_tasks * H
    TPAD = max(128, ((num_tasks + 127) // 128) * 128)   # lane-dense output width
    TILE_N = _pick_tile_n(N)

    # Tokens-as-rows; keep the incoming dtype (no f32 up-cast of x / Wd).
    x2d = hidden_state.reshape(N, H)
    wd = dense_w.astype(hidden_state.dtype)             # [T*H, H], no transpose
    bd = dense_b.reshape(1, TH).astype(jnp.float32)

    # Block-diagonal classifier weight: column t holds cls_w in rows [t*H,(t+1)*H).
    wc = cls_w.reshape(H).astype(jnp.float32)
    eye_t = jnp.eye(num_tasks, TPAD, dtype=jnp.float32)             # [T, TPAD]
    wc_bd = (eye_t[:, None, :] * wc[None, :, None]).reshape(TH, TPAD)
    bc_row = jnp.full((1, TPAD), cls_b.reshape(()), dtype=jnp.float32)

    grid = (N // TILE_N,)
    cost = pl.CostEstimate(
        flops=2 * N * H * TH + 2 * N * TH * TPAD,
        transcendentals=N * TH,
        bytes_accessed=(x2d.size * x2d.dtype.itemsize
                        + wd.size * wd.dtype.itemsize
                        + wc_bd.size * 4
                        + N * TPAD * 4),
    )

    out_full = pl.pallas_call(
        _head_kernel,
        out_shape=jax.ShapeDtypeStruct((N, TPAD), jnp.float32),
        grid=grid,
        in_specs=[
            pl.BlockSpec((TILE_N, H), lambda i: (i, 0)),   # x tile (pipelined)
            pl.BlockSpec((TH, H), lambda i: (0, 0)),       # dense W (resident)
            pl.BlockSpec((1, TH), lambda i: (0, 0)),       # dense b (resident)
            pl.BlockSpec((TH, TPAD), lambda i: (0, 0)),    # block-diag cls W
            pl.BlockSpec((1, TPAD), lambda i: (0, 0)),     # cls bias row
        ],
        out_specs=pl.BlockSpec((TILE_N, TPAD), lambda i: (i, 0)),
        compiler_params=pltpu.CompilerParams(
            dimension_semantics=("parallel",),             # megacore shard on v7x
            vmem_limit_bytes=48 * 1024 * 1024,             # safe on v7x's 64 MiB
        ),
        cost_estimate=cost,
    )(x2d, wd, bd, wc_bd, bc_row)

    # Drop lane padding, then [N, T] -> [B, S, T] -> [B, T, S] (permute(0,2,1)).
    out = out_full[:, :num_tasks].reshape(B, S, num_tasks).transpose(0, 2, 1)
    return out.astype(hidden_state.dtype)


def _reference(hidden_state, dense_w, dense_b, cls_w, cls_b, num_tasks):
    B, S, H = hidden_state.shape
    h = hidden_state @ dense_w.T + dense_b          # [B, S, T*H]
    h = h.reshape(B, S, num_tasks, H)
    h = jnp.tanh(h)
    y = h @ cls_w.reshape(H, 1) + cls_b             # [B, S, T, 1]
    return jnp.squeeze(y, -1).transpose(0, 2, 1)    # [B, T, S]


if __name__ == "__main__":
    # Small shapes consistent with the module's forward.
    B, S, H, T = 2, 8, 32, 3
    hidden_dropout_prob = 0.1  # unused at inference

    key = jax.random.PRNGKey(0)
    k_x, k_wd, k_bd, k_wc, k_bc = jax.random.split(key, 5)

    hidden_state = jax.random.normal(k_x, (B, S, H), dtype=jnp.float32)

    # Deterministic parameter init (shapes from nn.Linear in __init__).
    dense_w = jax.random.normal(k_wd, (T * H, H), dtype=jnp.float32) * 0.05
    dense_b = jax.random.normal(k_bd, (T * H,), dtype=jnp.float32) * 0.05
    cls_w = jax.random.normal(k_wc, (1, H), dtype=jnp.float32) * 0.05
    cls_b = jax.random.normal(k_bc, (1,), dtype=jnp.float32) * 0.05

    out = token_binary_classification_head(
        hidden_state, dense_w, dense_b, cls_w, cls_b, T)
    out = jax.block_until_ready(out)

    ref = _reference(hidden_state, dense_w, dense_b, cls_w, cls_b, T)
    assert out.shape == (B, T, S), out.shape
    assert jnp.allclose(out, ref, atol=1e-5, rtol=1e-5), "mismatch vs reference"

    print("KERNEL_OK")
</pallas_src>

<mosaic_0001>
module attributes {stable_mosaic.version = 11 : i64} {
  func.func @_head_kernel(%arg0: i32, %arg1: memref<16x32xf32, #tpu.memory_space<vmem>>, %arg2: memref<96x32xf32, #tpu.memory_space<vmem>>, %arg3: memref<1x96xf32, #tpu.memory_space<vmem>>, %arg4: memref<96x128xf32, #tpu.memory_space<vmem>>, %arg5: memref<1x128xf32, #tpu.memory_space<vmem>>, %arg6: memref<16x128xf32, #tpu.memory_space<vmem>>) attributes {dimension_semantics = [#tpu.dimension_semantics<parallel>], iteration_bounds = array<i64: 1>, scalar_prefetch = 0 : i64, scratch_operands = 0 : i64, tpu.core_type = #tpu.core_type<tc>, window_params = [{transform_indices = @transform_0, window_bounds = array<i64: 16, 32>}, {pipeline_mode = #tpu.pipeline_mode<synchronous>, transform_indices = @transform_1, window_bounds = array<i64: 96, 32>}, {pipeline_mode = #tpu.pipeline_mode<synchronous>, transform_indices = @transform_2, window_bounds = array<i64: 1, 96>}, {pipeline_mode = #tpu.pipeline_mode<synchronous>, transform_indices = @transform_3, window_bounds = array<i64: 96, 128>}, {pipeline_mode = #tpu.pipeline_mode<synchronous>, transform_indices = @transform_4, window_bounds = array<i64: 1, 128>}, {transform_indices = @transform_5, window_bounds = array<i64: 16, 128>}]} {
    %c0 = arith.constant 0 : index
    %c0_0 = arith.constant 0 : index
    %0 = vector.load %arg1[%c0, %c0_0] : memref<16x32xf32, #tpu.memory_space<vmem>>, vector<16x32xf32>
    %c0_1 = arith.constant 0 : index
    %c0_2 = arith.constant 0 : index
    %1 = vector.load %arg2[%c0_1, %c0_2] : memref<96x32xf32, #tpu.memory_space<vmem>>, vector<96x32xf32>
    %cst = arith.constant dense<0.000000e+00> : vector<16x96xf32>
    %2 = tpu.matmul %0, %1, %cst {dimension_numbers = #tpu.dot_dimension_numbers<[1], [1], [0], [0], [0, 0, 1, 0], [], []>} : vector<16x32xf32>, vector<96x32xf32>, vector<16x96xf32> -> vector<16x96xf32>
    %c0_3 = arith.constant 0 : index
    %c0_4 = arith.constant 0 : index
    %3 = vector.load %arg3[%c0_3, %c0_4] : memref<1x96xf32, #tpu.memory_space<vmem>>, vector<1x96xf32>
    %4 = vector.broadcast %3 : vector<1x96xf32> to vector<16x96xf32>
    %5 = arith.addf %2, %4 : vector<16x96xf32>
    %6 = math.tanh %5 : vector<16x96xf32>
    %c0_5 = arith.constant 0 : index
    %c0_6 = arith.constant 0 : index
    %7 = vector.load %arg4[%c0_5, %c0_6] : memref<96x128xf32, #tpu.memory_space<vmem>>, vector<96x128xf32>
    %cst_7 = arith.constant dense<0.000000e+00> : vector<16x128xf32>
    %8 = tpu.matmul %6, %7, %cst_7 {dimension_numbers = #tpu.dot_dimension_numbers<[1], [0], [0], [1], [0, 0, 1, 1], [], []>} : vector<16x96xf32>, vector<96x128xf32>, vector<16x128xf32> -> vector<16x128xf32>
    %c0_8 = arith.constant 0 : index
    %c0_9 = arith.constant 0 : index
    %9 = vector.load %arg5[%c0_8, %c0_9] : memref<1x128xf32, #tpu.memory_space<vmem>>, vector<1x128xf32>
    %10 = vector.broadcast %9 : vector<1x128xf32> to vector<16x128xf32>
    %11 = arith.addf %8, %10 : vector<16x128xf32>
    %c0_10 = arith.constant 0 : index
    %c0_11 = arith.constant 0 : index
    %12 = vector.load %arg6[%c0_10, %c0_11] : memref<16x128xf32, #tpu.memory_space<vmem>>, vector<16x128xf32>
    tpu.vector_store %arg6[%c0_10, %c0_11], %11 {strides = array<i32>} : memref<16x128xf32, #tpu.memory_space<vmem>>, vector<16x128xf32>,
    return
  }
  func.func @transform_0(%arg0: i32) -> (i32, i32) {
    %c0_i32 = arith.constant 0 : i32
    %c0_i32_0 = arith.constant 0 : i32
    return %arg0, %c0_i32 : i32, i32
  }
  func.func @transform_1(%arg0: i32) -> (i32, i32) {
    %c0_i32 = arith.constant 0 : i32
    %c0_i32_0 = arith.constant 0 : i32
    %c0_i32_1 = arith.constant 0 : i32
    return %c0_i32, %c0_i32_0 : i32, i32
  }
  func.func @transform_2(%arg0: i32) -> (i32, i32) {
    %c0_i32 = arith.constant 0 : i32
    %c0_i32_0 = arith.constant 0 : i32
    %c0_i32_1 = arith.constant 0 : i32
    return %c0_i32, %c0_i32_0 : i32, i32
  }
  func.func @transform_3(%arg0: i32) -> (i32, i32) {
    %c0_i32 = arith.constant 0 : i32
    %c0_i32_0 = arith.constant 0 : i32
    %c0_i32_1 = arith.constant 0 : i32
    return %c0_i32, %c0_i32_0 : i32, i32
  }
  func.func @transform_4(%arg0: i32) -> (i32, i32) {
    %c0_i32 = arith.constant 0 : i32
    %c0_i32_0 = arith.constant 0 : i32
    %c0_i32_1 = arith.constant 0 : i32
    return %c0_i32, %c0_i32_0 : i32, i32
  }
  func.func @transform_5(%arg0: i32) -> (i32, i32) {
    %c0_i32 = arith.constant 0 : i32
    %c0_i32_0 = arith.constant 0 : i32
    return %arg0, %c0_i32 : i32, i32
  }
}

</mosaic_0001>

<llo_original>
// kernel: tpu_custom_call.1
$region0: #{tpu_custom_call.1}
  #allocation0 [shape = 'u32[]', space=smem, size = 0x4, offset = 0x4, fixed_abs, tag = 'smem constant byte address 0x4 - core index']
  #allocation1 [shape = 'u32[144,128]{1,0:T(1,128)}', space=vmem, size = 0x12000, scoped, tag = 'internal scratch']
  %s0 = inlined_call_operand.vmem [shape: f32[16,32], index: 0, kind: input, shape index: {}]
  %s1 = inlined_call_operand.vmem [shape: f32[96,32], index: 1, kind: input, shape index: {}]
  %s2 = inlined_call_operand.vmem [shape: f32[1,96], index: 2, kind: input, shape index: {}]
  %s3 = inlined_call_operand.vmem [shape: f32[96,128], index: 3, kind: input, shape index: {}]
  %s4 = inlined_call_operand.vmem [shape: f32[1,128], index: 4, kind: input, shape index: {}]
  %s5 = inlined_call_operand.hbm [shape: f32[16,128], index: 5, kind: output, shape index: {}]
  %s6 = sld [smem:[#allocation0]]
  $region30: #{tpu_custom_call.1} parent=0
    _
  %s8 = ssub.s32 1, %s6
  %s9 = scalar_select 0, %s8, %s6
  $region1: #{tpu_custom_call.1} parent=0
    #allocation2 [shape = 'u8[8192]{0}', space=vmem, size = 0x2000, scoped, tag = 'output window, operand 0, single buffered']
    #allocation3 [shape = 's32[1]{0}', space=sflag, size = 0x4, scoped, tag = 'scoped memory for tpu_custom_call.1']
    %10 = vsyncpa [#allocation3], 0
    // Predicated region
    $region2: #{tpu_custom_call.1} parent=1 // pred_check
      _
    $region3: #{tpu_custom_call.1} parent=1 // pred_check_branch
      %12 = sbr.rel (0) target = $region5
    $region4: #{tpu_custom_call.1} parent=1 // pred_region
      _
    $region5: #{tpu_custom_call.1} parent=1 // pred_fallthru
      _
    // Predicated region
    $region6: #{tpu_custom_call.1} parent=1 // pred_check
      _
    $region7: #{tpu_custom_call.1} parent=1 // pred_check_branch
      %14 = sbr.rel (0) target = $region9
    $region8: #{tpu_custom_call.1} parent=1 // pred_region
      _
    $region9: #{tpu_custom_call.1} parent=1 // pred_fallthru
      _
    // Predicated region
    $region10: #{tpu_custom_call.1} parent=1 // pred_check
      _
    $region11: #{tpu_custom_call.1} parent=1 // pred_check_branch
      %16 = sbr.rel (0) target = $region13
    $region12: #{tpu_custom_call.1} parent=1 // pred_region
      _
    $region13: #{tpu_custom_call.1} parent=1 // pred_fallthru
      _
    // Predicated region
    $region14: #{tpu_custom_call.1} parent=1 // pred_check
      _
    $region15: #{tpu_custom_call.1} parent=1 // pred_check_branch
      %18 = sbr.rel (0) target = $region17
    $region16: #{tpu_custom_call.1} parent=1 // pred_region
      _
    $region17: #{tpu_custom_call.1} parent=1 // pred_fallthru
      _
    // Predicated region
    $region18: #{tpu_custom_call.1} parent=1 // pred_check
      _
    $region19: #{tpu_custom_call.1} parent=1 // pred_check_branch
      %20 = sbr.rel (0) target = $region21
    $region20: #{tpu_custom_call.1} parent=1 // pred_region
      _
    $region21: #{tpu_custom_call.1} parent=1 // pred_fallthru
      _
    %v21 = vld [vmem:[%s0] sm:$0xff]
    %v22 = vld [vmem:[%s0 + $0x8] sm:$0xff]
    %v23 = vld [vmem:[%s1] sm:$0xff]
    %v24 = vld [vmem:[%s1 + $0x8] sm:$0xff]
    %v25 = vld [vmem:[%s1 + $0x10] sm:$0xff]
    %v26 = vld [vmem:[%s1 + $0x18] sm:$0xff]
    %v27 = vld [vmem:[%s1 + $0x20] sm:$0xff]
    %v28 = vld [vmem:[%s1 + $0x28] sm:$0xff]
    %v29 = vld [vmem:[%s1 + $0x30] sm:$0xff]
    %v30 = vld [vmem:[%s1 + $0x38] sm:$0xff]
    %v31 = vld [vmem:[%s1 + $0x40] sm:$0xff]
    %v32 = vld [vmem:[%s1 + $0x48] sm:$0xff]
    %v33 = vld [vmem:[%s1 + $0x50] sm:$0xff]
    %v34 = vld [vmem:[%s1 + $0x58] sm:$0xff]
    %v35 = vld [vmem:[%s2] sm:$0x1]
    %v37 = vlaneseq
    %v38 = vshrl.u32 %v37, 7
    %v39 = vsub.s32 0, %v38
    %v40 = vrot.slane %v35, %v39
    %vm42 = vcmask 261120
    %v44 = vsel %vm42, %v21, 0
    %v47 = vsel %vm42, %v22, 0
    %v50 = vsel %vm42, %v23, 0
    %v53 = vsel %vm42, %v24, 0
    %v56 = vsel %vm42, %v25, 0
    %v59 = vsel %vm42, %v26, 0
    %v62 = vsel %vm42, %v27, 0
    %v65 = vsel %vm42, %v28, 0
    %v68 = vsel %vm42, %v29, 0
    %v71 = vsel %vm42, %v30, 0
    %v74 = vsel %vm42, %v31, 0
    %v77 = vsel %vm42, %v32, 0
    %v80 = vsel %vm42, %v33, 0
    %v83 = vsel %vm42, %v34, 0
    %85 = vmatprep.subr.mxu0 0.0
    %86 = vmatpush1.xpose.msra.mxu0 %v50
    %87 = vmatprep.subr.mxu0 0.0
    %88 = vmatpush1.xpose.msra.mxu0 %v53
    %89 = vmatprep.subr.mxu0 0.0
    %90 = vmatpush1.xpose.msra.mxu0 %v56
    %91 = vmatprep.subr.mxu0 0.0
    %92 = vmatpush1.xpose.msra.mxu0 %v59
    %93 = vmatprep.subr.mxu0 0.0
    %94 = vmatpush1.xpose.msra.mxu0 %v62
    %95 = vmatprep.subr.mxu0 0.0
    %96 = vmatpush1.xpose.msra.mxu0 %v65
    %97 = vmatprep.subr.mxu0 0.0
    %98 = vmatpush1.xpose.msra.mxu0 %v68
    %99 = vmatprep.subr.mxu0 0.0
    %100 = vmatpush1.xpose.msra.mxu0 %v71
    %101 = vmatprep.subr.mxu0 0.0
    %102 = vmatpush1.xpose.msra.mxu0 %v74
    %103 = vmatprep.subr.mxu0 0.0
    %104 = vmatpush1.xpose.msra.mxu0 %v77
    %105 = vmatprep.subr.mxu0 0.0
    %106 = vmatpush1.xpose.msra.mxu0 %v80
    %107 = vmatprep.subr.mxu0 0.0
    %108 = vmatpush1.xpose.msra.mxu0 %v83
    %109 = vmatprep.subr.mxu0 0.0
    %110 = vmatpush1.xpose.msra.mxu0 0.0
    %111 = vmatprep.subr.mxu0 0.0
    %112 = vmatpush1.xpose.msra.mxu0 0.0
    %113 = vmatprep.subr.mxu0 0.0
    %114 = vmatpush1.xpose.msra.mxu0 0.0
    %115 = vmatprep.subr.mxu0 0.0
    %116 = vmatpush1.xpose.msra.mxu0 0.0
    %117 = vmatprep.subr.mxu0 0.0
    %118 = vmatpush1.xpose.msra.mxu0 0.0
    %119 = vmatprep.subr.mxu0 0.0
    %120 = vmatpush1.xpose.msra.mxu0 0.0
    %121 = vmatprep.subr.mxu0 0.0
    %122 = vmatpush1.xpose.msra.mxu0 0.0
    %123 = vmatprep.subr.mxu0 0.0
    %124 = vmatpush1.xpose.msra.mxu0 0.0
    %125 = vmatprep.subr.mxu0 0.0
    %126 = vmatpush1.xpose.msra.mxu0 0.0
    %127 = vmatprep.subr.mxu0 0.0
    %128 = vmatpush1.xpose.msra.mxu0 0.0
    %129 = vmatprep.subr.mxu0 0.0
    %130 = vmatpush1.xpose.msra.mxu0 0.0
    %131 = vmatprep.subr.mxu0 0.0
    %132 = vmatpush1.xpose.msra.mxu0 0.0
    %133 = vmatprep.subr.mxu0 0.0
    %134 = vmatpush1.xpose.msra.mxu0 0.0
    %135 = vmatprep.subr.mxu0 0.0
    %136 = vmatpush1.xpose.msra.mxu0 0.0
    %137 = vmatprep.subr.mxu0 0.0
    %138 = vmatpush1.xpose.msra.mxu0 0.0
    %139 = vmatprep.subr.mxu0 0.0
    %140 = vmatpush1.xpose.msra.mxu0 0.0
    %141 = vmatprep.subr.mxu0 0.0
    %142 = vmatpush1.xpose.msra.mxu0 0.0
    %143 = vmatprep.subr.mxu0 0.0
    %144 = vmatpush1.xpose.msra.mxu0 0.0
    %145 = vmatprep.subr.mxu0 0.0
    %146 = vmatpush1.xpose.msra.mxu0 0.0
    %147 = vmatprep.subr.mxu0 0.0
    %148 = vmatpush1.xpose.msra.mxu0 0.0
    %149 = vmatprep.mubr.f32.mxu0 0.0
    %150 = vmatmul.mubr.f32.gmra.mrb[0].mxu0 %v44
    %v151 = vpop.f32.mrb[0].mxu0
    %v152 = vadd.f32 %v40, %v151
    %v153 = vpop.f32.mrb[0].mxu0
    %154 = vmatprep.mubr.f32.mxu0 0.0
    %155 = vmatmul.mubr.f32.gmra.mrb[0].mxu0 %v47
    %v156 = vpop.f32.mrb[0].mxu0
    %v157 = vadd.f32 %v40, %v156
    %v158 = vpop.f32.mrb[0].mxu0
    %159 = vdwg.mxu0
    %v160 = vtanh.pop %v152
    %v161 = vtanh.pop %v157
    %v162 = vld [vmem:[%s3] sm:$0xff]
    %v163 = vld [vmem:[%s3 + $0x8] sm:$0xff]
    %v164 = vld [vmem:[%s3 + $0x10] sm:$0xff]
    %v165 = vld [vmem:[%s3 + $0x18] sm:$0xff]
    %v166 = vld [vmem:[%s3 + $0x20] sm:$0xff]
    %v167 = vld [vmem:[%s3 + $0x28] sm:$0xff]
    %v168 = vld [vmem:[%s3 + $0x30] sm:$0xff]
    %v169 = vld [vmem:[%s3 + $0x38] sm:$0xff]
    %v170 = vld [vmem:[%s3 + $0x40] sm:$0xff]
    %v171 = vld [vmem:[%s3 + $0x48] sm:$0xff]
    %v172 = vld [vmem:[%s3 + $0x50] sm:$0xff]
    %v173 = vld [vmem:[%s3 + $0x58] sm:$0xff]
    %v174 = vld [vmem:[%s4] sm:$0x1]
    %v176 = vlaneseq
    %v177 = vshrl.u32 %v176, 7
    %v178 = vsub.s32 0, %v177
    %v179 = vrot.slane %v174, %v178
    %vm181 = vcmask 785408
    %v183 = vsel %vm181, %v160, 0
    %v186 = vsel %vm181, %v161, 0
    %188 = vmatprep.subr.mxu0 0.0
    %189 = vmatpush1.msra.mxu0 %v162
    %190 = vmatprep.subr.mxu0 0.0
    %191 = vmatpush1.msra.mxu0 %v163
    %192 = vmatprep.subr.mxu0 0.0
    %193 = vmatpush1.msra.mxu0 %v164
    %194 = vmatprep.subr.mxu0 0.0
    %195 = vmatpush1.msra.mxu0 %v165
    %196 = vmatprep.subr.mxu0 0.0
    %197 = vmatpush1.msra.mxu0 %v166
    %198 = vmatprep.subr.mxu0 0.0
    %199 = vmatpush1.msra.mxu0 %v167
    %200 = vmatprep.subr.mxu0 0.0
    %201 = vmatpush1.msra.mxu0 %v168
    %202 = vmatprep.subr.mxu0 0.0
    %203 = vmatpush1.msra.mxu0 %v169
    %204 = vmatprep.subr.mxu0 0.0
    %205 = vmatpush1.msra.mxu0 %v170
    %206 = vmatprep.subr.mxu0 0.0
    %207 = vmatpush1.msra.mxu0 %v171
    %208 = vmatprep.subr.mxu0 0.0
    %209 = vmatpush1.msra.mxu0 %v172
    %210 = vmatprep.subr.mxu0 0.0
    %211 = vmatpush1.msra.mxu0 %v173
    %212 = vmatprep.subr.mxu0 0.0
    %213 = vmatpush1.msra.mxu0 0.0
    %214 = vmatprep.subr.mxu0 0.0
    %215 = vmatpush1.msra.mxu0 0.0
    %216 = vmatprep.subr.mxu0 0.0
    %217 = vmatpush1.msra.mxu0 0.0
    %218 = vmatprep.subr.mxu0 0.0
    %219 = vmatpush1.msra.mxu0 0.0
    %220 = vmatprep.subr.mxu0 0.0
    %221 = vmatpush1.msra.mxu0 0.0
    %222 = vmatprep.subr.mxu0 0.0
    %223 = vmatpush1.msra.mxu0 0.0
    %224 = vmatprep.subr.mxu0 0.0
    %225 = vmatpush1.msra.mxu0 0.0
    %226 = vmatprep.subr.mxu0 0.0
    %227 = vmatpush1.msra.mxu0 0.0
    %228 = vmatprep.subr.mxu0 0.0
    %229 = vmatpush1.msra.mxu0 0.0
    %230 = vmatprep.subr.mxu0 0.0
    %231 = vmatpush1.msra.mxu0 0.0
    %232 = vmatprep.subr.mxu0 0.0
    %233 = vmatpush1.msra.mxu0 0.0
    %234 = vmatprep.subr.mxu0 0.0
    %235 = vmatpush1.msra.mxu0 0.0
    %236 = vmatprep.subr.mxu0 0.0
    %237 = vmatpush1.msra.mxu0 0.0
    %238 = vmatprep.subr.mxu0 0.0
    %239 = vmatpush1.msra.mxu0 0.0
    %240 = vmatprep.subr.mxu0 0.0
    %241 = vmatpush1.msra.mxu0 0.0
    %242 = vmatprep.subr.mxu0 0.0
    %243 = vmatpush1.msra.mxu0 0.0
    %244 = vmatprep.subr.mxu0 0.0
    %245 = vmatpush1.msra.mxu0 0.0
    %246 = vmatprep.subr.mxu0 0.0
    %247 = vmatpush1.msra.mxu0 0.0
    %248 = vmatprep.subr.mxu0 0.0
    %249 = vmatpush1.msra.mxu0 0.0
    %250 = vmatprep.subr.mxu0 0.0
    %251 = vmatpush1.msra.mxu0 0.0
    %252 = vmatprep.mubr.f32.mxu0 0.0
    %253 = vmatmul.mubr.f32.gmra.mrb[0].mxu0 %v183
    %v254 = vpop.f32.mrb[0].mxu0
    %v255 = vadd.f32 %v179, %v254
    %v256 = vpop.f32.mrb[0].mxu0
    %257 = vmatprep.mubr.f32.mxu0 0.0
    %258 = vmatmul.mubr.f32.gmra.mrb[0].mxu0 %v186
    %v259 = vpop.f32.mrb[0].mxu0
    %v260 = vadd.f32 %v179, %v259
    %v261 = vpop.f32.mrb[0].mxu0
    %262 = vdwg.mxu0
    %263 = vst [vmem:[#allocation2] sm:$0xff] %v255
    %264 = vst [vmem:[#allocation2 + $0x8] sm:$0xff] %v260
    // Predicated region
    $region22: #{tpu_custom_call.1} parent=1 // pred_check
      _
    $region23: #{tpu_custom_call.1} parent=1 // pred_check_branch
      %266 = sbr.rel (0) target = $region25
    $region24: #{tpu_custom_call.1} parent=1 // pred_region
      %s268 = ssub.s32 256, 256
      %269 = vsyncadd [#allocation3], %s268
      %s270 = sshll.u32 [#allocation2], 4
      %s271 = int_to_ptr.vmem [resolvable:$true] %s270
      %276 = dma.vmem_to_hbm [thread:$0]  %s271, 256, %s5, [#allocation3], 128, 128, 8
    $region25: #{tpu_custom_call.1} parent=1 // pred_fallthru
      _
    // Predicated region
    $region26: #{tpu_custom_call.1} parent=1 // pred_check
      _
    $region27: #{tpu_custom_call.1} parent=1 // pred_check_branch
      %278 = sbr.rel (0) target = $region29
    $region28: #{tpu_custom_call.1} parent=1 // pred_region
      %279 = dma.done [#allocation3], 256
    $region29: #{tpu_custom_call.1} parent=1 // pred_fallthru
      _
    %280 = vsyncpa [#allocation3], 1

</llo_original>
